<compile_context>
chip_gen: v7x
topology: tpu7x:2x2x1
jax: 0.10.0
libtpu: 0.0.40
codegen_flags: <defaults>
</compile_context>

<pallas_src>
import functools

import jax
import jax.numpy as jnp
from jax.experimental import pallas as pl
from jax.experimental.pallas import tpu as pltpu


def _round_up(x, m):
    return ((x + m - 1) // m) * m


def _default_block_b(batch):
    # At least 2 grid steps when the batch allows (megacore sharding on v7x),
    # rows a multiple of 8 (f32 sublane), capped so activation tiles stay
    # modest and double-buffer comfortably in VMEM.
    half = -(-batch // 2)
    bb = min(512, half)
    return max(8, _round_up(bb, 8))


def make_mlp_bilateral_kernel(num_hidden_layers, block_b, compute_dtype):
    """Kernel body for a fixed number of hidden layers and block size."""
    n_linear = num_hidden_layers + 1  # hidden layers + output layer

    def kernel(*refs):
        # refs = (le, re, w0, b0, w1, b1, ..., w_last, b_last, out)
        le_ref, re_ref = refs[0], refs[1]
        wb_refs = refs[2:2 + 2 * n_linear]
        out_ref = refs[2 + 2 * n_linear]

        # Stack both eyes -> single (2*block_b, D) slab: the shared MLP runs
        # once, halving MXU push sequences and amortizing fill/drain.
        x = jnp.concatenate([le_ref[...], re_ref[...]], axis=0)
        h = x.astype(compute_dtype)

        for i in range(num_hidden_layers):
            w = wb_refs[2 * i][...]            # (in, out)  compute_dtype (bf16)
            b = wb_refs[2 * i + 1][...]        # (1, out)   f32
            y = jnp.dot(h, w, preferred_element_type=jnp.float32) + b
            h = jnp.maximum(y, 0.0).astype(compute_dtype)   # ReLU (f32) -> bf16

        w = wb_refs[2 * num_hidden_layers][...]
        b = wb_refs[2 * num_hidden_layers + 1][...]
        logits = jnp.dot(h, w, preferred_element_type=jnp.float32) + b  # f32

        le_logit = logits[:block_b]
        re_logit = logits[block_b:]
        # sigmoid(a) * sigmoid(b) == 1 / ((1 + e^-a) * (1 + e^-b))
        # (2 exp + 1 approx reciprocal on the EUP instead of 2 full sigmoids).
        denom = (1.0 + jnp.exp(-le_logit)) * (1.0 + jnp.exp(-re_logit))
        out = pl.reciprocal(denom, approx=True)
        out_ref[...] = out.astype(out_ref.dtype)

    return kernel


def mlp_bilateral_forward(le, re, params, *, num_hidden_layers, block_b=None,
                          compute_dtype=jnp.bfloat16):
    """params: list of (W, b) with W shaped (in, out), b shaped (1, out)."""
    assert le.shape == re.shape and le.dtype == re.dtype
    batch, input_dim = le.shape
    output_dim = params[-1][0].shape[1]
    out_dtype = le.dtype

    if block_b is None:
        block_b = _default_block_b(batch)
    block_b = max(8, _round_up(block_b, 8))

    # Pad the batch so the grid covers it exactly (padding rows discarded).
    b_pad = _round_up(batch, block_b)
    if b_pad != batch:
        le = jnp.pad(le, ((0, b_pad - batch), (0, 0)))
        re = jnp.pad(re, ((0, b_pad - batch), (0, 0)))

    # Lane-dense output: pad the final layer to a multiple of 128 columns so
    # the output store is unmasked; slice the real columns back afterwards.
    out_pad = _round_up(output_dim, 128)

    # TODO(synk): for intermediate_width >= ~2K, tile the weight N dimension on
    # an 'arbitrary' grid axis instead of keeping full (in,out) weights
    # resident (v7x only has 64 MiB VMEM).
    flat_params = []
    for li, (w, b) in enumerate(params):
        if li == len(params) - 1 and out_pad != output_dim:
            w = jnp.pad(w, ((0, 0), (0, out_pad - output_dim)))
            b = jnp.pad(b, ((0, 0), (0, out_pad - output_dim)))
        flat_params.append(w.astype(compute_dtype))   # MXU operand: bf16
        flat_params.append(b.astype(jnp.float32))     # VPU bias-add: f32

    grid = (b_pad // block_b,)

    act_spec = pl.BlockSpec((block_b, input_dim), lambda i: (i, 0))
    # Bind ndim eagerly (late-binding bug fix); constant block index => the
    # weights/biases stay resident across grid steps.
    param_specs = [
        pl.BlockSpec(p.shape, lambda i, _nd=p.ndim: (0,) * _nd)
        for p in flat_params
    ]
    out_spec = pl.BlockSpec((block_b, out_pad), lambda i: (i, 0))

    # Explicit scoped-VMEM budget (default is well below physical).
    in_item = jnp.dtype(le.dtype).itemsize
    out_item = jnp.dtype(out_dtype).itemsize
    act_bytes = 2 * 2 * block_b * input_dim * in_item          # le+re, dbl-buf
    out_bytes = 2 * block_b * out_pad * out_item               # out, dbl-buf
    param_bytes = sum(2 * int(p.size) * p.dtype.itemsize for p in flat_params)
    max_w = max([input_dim, out_pad] + [w.shape[1] for w, _ in params])
    scratch_bytes = 6 * (2 * block_b) * max_w * 4              # hidden temps
    needed = act_bytes + out_bytes + param_bytes + scratch_bytes
    vmem_limit = int(min(60 * 1024 * 1024, max(2 * needed, 32 * 1024 * 1024)))

    # Advisory cost estimate for the XLA scheduler.
    mac = sum(int(w.size) for w in flat_params[0::2])
    flops = 2 * (2 * b_pad) * mac
    transcendentals = 3 * b_pad * out_pad
    bytes_accessed = (
        2 * b_pad * input_dim * in_item
        + sum(int(p.size) * p.dtype.itemsize for p in flat_params)
        + b_pad * out_pad * out_item
    )

    kernel = make_mlp_bilateral_kernel(num_hidden_layers, block_b, compute_dtype)

    out = pl.pallas_call(
        kernel,
        out_shape=jax.ShapeDtypeStruct((b_pad, out_pad), out_dtype),
        grid_spec=pltpu.PrefetchScalarGridSpec(
            num_scalar_prefetch=0,
            grid=grid,
            in_specs=[act_spec, act_spec] + param_specs,
            out_specs=out_spec,
        ),
        compiler_params=pltpu.CompilerParams(
            dimension_semantics=("parallel",),
            vmem_limit_bytes=vmem_limit,
        ),
        cost_estimate=pl.CostEstimate(
            flops=flops,
            transcendentals=transcendentals,
            bytes_accessed=bytes_accessed,
        ),
    )(le, re, *flat_params)

    return out[:batch, :output_dim]


def init_params(key, input_dim, output_dim, num_hidden_layers, width):
    """Deterministic synthetic init (matches shapes of the torch module)."""
    params = []
    in_size = input_dim
    dims = [width] * num_hidden_layers + [output_dim]
    for out_size in dims:
        key, kw, kb = jax.random.split(key, 3)
        scale = 1.0 / jnp.sqrt(jnp.float32(in_size))
        w = jax.random.uniform(kw, (in_size, out_size), jnp.float32, -scale, scale)
        b = jax.random.uniform(kb, (1, out_size), jnp.float32, -scale, scale)
        params.append((w, b))
        in_size = out_size
    return params


def reference_forward(le, re, params, num_hidden_layers,
                      compute_dtype=jnp.bfloat16):
    """Pure-JAX reference mirroring the kernel's bf16-matmul / f32-accum path."""
    def mlp(x):
        h = x.astype(compute_dtype)
        for i in range(num_hidden_layers):
            w, b = params[i]
            y = jnp.dot(h, w.astype(compute_dtype),
                        preferred_element_type=jnp.float32) + b
            h = jnp.maximum(y, 0.0).astype(compute_dtype)
        w, b = params[-1]
        return jnp.dot(h, w.astype(compute_dtype),
                       preferred_element_type=jnp.float32) + b

    return jax.nn.sigmoid(mlp(le)) * jax.nn.sigmoid(mlp(re))


if __name__ == "__main__":
    # Small shapes consistent with the module; batch chosen so the grid has
    # 2 steps (exercises batch tiling / megacore-friendly parallel axis).
    batch = 16
    input_dim = 16
    output_dim = 8
    num_hidden_layers = 2
    intermediate_width = 32

    key = jax.random.PRNGKey(0)
    k_le, k_re, k_params = jax.random.split(key, 3)

    le = jax.random.normal(k_le, (batch, input_dim), jnp.float32)
    re = jax.random.normal(k_re, (batch, input_dim), jnp.float32)
    params = init_params(
        k_params, input_dim, output_dim, num_hidden_layers, intermediate_width
    )

    fwd = functools.partial(
        mlp_bilateral_forward, num_hidden_layers=num_hidden_layers
    )
    out = fwd(le, re, params)
    out = jax.block_until_ready(out)

    ref = reference_forward(le, re, params, num_hidden_layers)
    assert out.shape == (batch, output_dim)
    max_err = float(jnp.max(jnp.abs(out - ref)))
    assert jnp.allclose(out, ref, atol=2e-3, rtol=2e-3), max_err

    print("KERNEL_OK")
</pallas_src>

<mosaic_0001>
module attributes {stable_mosaic.version = 11 : i64} {
  func.func @kernel(%arg0: i32, %arg1: memref<8x16xf32, #tpu.memory_space<vmem>>, %arg2: memref<8x16xf32, #tpu.memory_space<vmem>>, %arg3: memref<16x32xbf16, #tpu.memory_space<vmem>>, %arg4: memref<1x32xf32, #tpu.memory_space<vmem>>, %arg5: memref<32x32xbf16, #tpu.memory_space<vmem>>, %arg6: memref<1x32xf32, #tpu.memory_space<vmem>>, %arg7: memref<32x128xbf16, #tpu.memory_space<vmem>>, %arg8: memref<1x128xf32, #tpu.memory_space<vmem>>, %arg9: memref<8x128xf32, #tpu.memory_space<vmem>>) attributes {dimension_semantics = [#tpu.dimension_semantics<parallel>], iteration_bounds = array<i64: 2>, scalar_prefetch = 0 : i64, scratch_operands = 0 : i64, tpu.core_type = #tpu.core_type<tc>, window_params = [{transform_indices = @transform_0, window_bounds = array<i64: 8, 16>}, {transform_indices = @transform_1, window_bounds = array<i64: 8, 16>}, {pipeline_mode = #tpu.pipeline_mode<synchronous>, transform_indices = @transform_2, window_bounds = array<i64: 16, 32>}, {pipeline_mode = #tpu.pipeline_mode<synchronous>, transform_indices = @transform_3, window_bounds = array<i64: 1, 32>}, {pipeline_mode = #tpu.pipeline_mode<synchronous>, transform_indices = @transform_4, window_bounds = array<i64: 32, 32>}, {pipeline_mode = #tpu.pipeline_mode<synchronous>, transform_indices = @transform_5, window_bounds = array<i64: 1, 32>}, {pipeline_mode = #tpu.pipeline_mode<synchronous>, transform_indices = @transform_6, window_bounds = array<i64: 32, 128>}, {pipeline_mode = #tpu.pipeline_mode<synchronous>, transform_indices = @transform_7, window_bounds = array<i64: 1, 128>}, {transform_indices = @transform_8, window_bounds = array<i64: 8, 128>}]} {
    %c0 = arith.constant 0 : index
    %c0_0 = arith.constant 0 : index
    %0 = vector.load %arg1[%c0, %c0_0] : memref<8x16xf32, #tpu.memory_space<vmem>>, vector<8x16xf32>
    %c0_1 = arith.constant 0 : index
    %c0_2 = arith.constant 0 : index
    %1 = vector.load %arg2[%c0_1, %c0_2] : memref<8x16xf32, #tpu.memory_space<vmem>>, vector<8x16xf32>
    %2 = tpu.concatenate %0, %1 in 0 : vector<8x16xf32>, vector<8x16xf32> -> vector<16x16xf32>
    %3 = arith.truncf %2 : vector<16x16xf32> to vector<16x16xbf16>
    %c0_3 = arith.constant 0 : index
    %c0_4 = arith.constant 0 : index
    %4 = vector.load %arg3[%c0_3, %c0_4] : memref<16x32xbf16, #tpu.memory_space<vmem>>, vector<16x32xbf16>
    %c0_5 = arith.constant 0 : index
    %c0_6 = arith.constant 0 : index
    %5 = vector.load %arg4[%c0_5, %c0_6] : memref<1x32xf32, #tpu.memory_space<vmem>>, vector<1x32xf32>
    %cst = arith.constant dense<0.000000e+00> : vector<16x32xf32>
    %6 = tpu.matmul %3, %4, %cst {dimension_numbers = #tpu.dot_dimension_numbers<[1], [0], [0], [1], [0, 0, 1, 1], [], []>} : vector<16x16xbf16>, vector<16x32xbf16>, vector<16x32xf32> -> vector<16x32xf32>
    %7 = vector.broadcast %5 : vector<1x32xf32> to vector<16x32xf32>
    %8 = arith.addf %6, %7 : vector<16x32xf32>
    %cst_7 = arith.constant 0.000000e+00 : f32
    %9 = vector.broadcast %cst_7 : f32 to vector<16x32xf32>
    %10 = arith.maximumf %8, %9 : vector<16x32xf32>
    %11 = arith.truncf %10 : vector<16x32xf32> to vector<16x32xbf16>
    %c0_8 = arith.constant 0 : index
    %c0_9 = arith.constant 0 : index
    %12 = vector.load %arg5[%c0_8, %c0_9] : memref<32x32xbf16, #tpu.memory_space<vmem>>, vector<32x32xbf16>
    %c0_10 = arith.constant 0 : index
    %c0_11 = arith.constant 0 : index
    %13 = vector.load %arg6[%c0_10, %c0_11] : memref<1x32xf32, #tpu.memory_space<vmem>>, vector<1x32xf32>
    %cst_12 = arith.constant dense<0.000000e+00> : vector<16x32xf32>
    %14 = tpu.matmul %11, %12, %cst_12 {dimension_numbers = #tpu.dot_dimension_numbers<[1], [0], [0], [1], [0, 0, 1, 1], [], []>} : vector<16x32xbf16>, vector<32x32xbf16>, vector<16x32xf32> -> vector<16x32xf32>
    %15 = vector.broadcast %13 : vector<1x32xf32> to vector<16x32xf32>
    %16 = arith.addf %14, %15 : vector<16x32xf32>
    %cst_13 = arith.constant 0.000000e+00 : f32
    %17 = vector.broadcast %cst_13 : f32 to vector<16x32xf32>
    %18 = arith.maximumf %16, %17 : vector<16x32xf32>
    %19 = arith.truncf %18 : vector<16x32xf32> to vector<16x32xbf16>
    %c0_14 = arith.constant 0 : index
    %c0_15 = arith.constant 0 : index
    %20 = vector.load %arg7[%c0_14, %c0_15] : memref<32x128xbf16, #tpu.memory_space<vmem>>, vector<32x128xbf16>
    %c0_16 = arith.constant 0 : index
    %c0_17 = arith.constant 0 : index
    %21 = vector.load %arg8[%c0_16, %c0_17] : memref<1x128xf32, #tpu.memory_space<vmem>>, vector<1x128xf32>
    %cst_18 = arith.constant dense<0.000000e+00> : vector<16x128xf32>
    %22 = tpu.matmul %19, %20, %cst_18 {dimension_numbers = #tpu.dot_dimension_numbers<[1], [0], [0], [1], [0, 0, 1, 1], [], []>} : vector<16x32xbf16>, vector<32x128xbf16>, vector<16x128xf32> -> vector<16x128xf32>
    %23 = vector.broadcast %21 : vector<1x128xf32> to vector<16x128xf32>
    %24 = arith.addf %22, %23 : vector<16x128xf32>
    %25 = vector.extract_strided_slice %24 {offsets = [0, 0], sizes = [8, 128], strides = [1, 1]} : vector<16x128xf32> to vector<8x128xf32>
    %26 = vector.extract_strided_slice %24 {offsets = [8, 0], sizes = [8, 128], strides = [1, 1]} : vector<16x128xf32> to vector<8x128xf32>
    %cst_19 = arith.constant 0.000000e+00 : f32
    %27 = vector.broadcast %cst_19 : f32 to vector<8x128xf32>
    %28 = arith.subf %27, %25 : vector<8x128xf32>
    %29 = math.exp %28 : vector<8x128xf32>
    %cst_20 = arith.constant 1.000000e+00 : f32
    %30 = vector.broadcast %cst_20 : f32 to vector<8x128xf32>
    %31 = arith.addf %30, %29 : vector<8x128xf32>
    %cst_21 = arith.constant 0.000000e+00 : f32
    %32 = vector.broadcast %cst_21 : f32 to vector<8x128xf32>
    %33 = arith.subf %32, %26 : vector<8x128xf32>
    %34 = math.exp %33 : vector<8x128xf32>
    %cst_22 = arith.constant 1.000000e+00 : f32
    %35 = vector.broadcast %cst_22 : f32 to vector<8x128xf32>
    %36 = arith.addf %35, %34 : vector<8x128xf32>
    %37 = arith.mulf %31, %36 : vector<8x128xf32>
    %38 = tpu.reciprocal %37 {approx = true} : vector<8x128xf32> -> vector<8x128xf32>
    %c0_23 = arith.constant 0 : index
    %c0_24 = arith.constant 0 : index
    %39 = vector.load %arg9[%c0_23, %c0_24] : memref<8x128xf32, #tpu.memory_space<vmem>>, vector<8x128xf32>
    tpu.vector_store %arg9[%c0_23, %c0_24], %38 {strides = array<i32>} : memref<8x128xf32, #tpu.memory_space<vmem>>, vector<8x128xf32>,
    return
  }
  func.func @transform_0(%arg0: i32) -> (i32, i32) {
    %c0_i32 = arith.constant 0 : i32
    %c0_i32_0 = arith.constant 0 : i32
    return %arg0, %c0_i32 : i32, i32
  }
  func.func @transform_1(%arg0: i32) -> (i32, i32) {
    %c0_i32 = arith.constant 0 : i32
    %c0_i32_0 = arith.constant 0 : i32
    return %arg0, %c0_i32 : i32, i32
  }
  func.func @transform_2(%arg0: i32) -> (i32, i32) {
    %c0_i32 = arith.constant 0 : i32
    %c0_i32_0 = arith.constant 0 : i32
    %c0_i32_1 = arith.constant 0 : i32
    return %c0_i32, %c0_i32_0 : i32, i32
  }
  func.func @transform_3(%arg0: i32) -> (i32, i32) {
    %c0_i32 = arith.constant 0 : i32
    %c0_i32_0 = arith.constant 0 : i32
    %c0_i32_1 = arith.constant 0 : i32
    return %c0_i32, %c0_i32_0 : i32, i32
  }
  func.func @transform_4(%arg0: i32) -> (i32, i32) {
    %c0_i32 = arith.constant 0 : i32
    %c0_i32_0 = arith.constant 0 : i32
    %c0_i32_1 = arith.constant 0 : i32
    return %c0_i32, %c0_i32_0 : i32, i32
  }
  func.func @transform_5(%arg0: i32) -> (i32, i32) {
    %c0_i32 = arith.constant 0 : i32
    %c0_i32_0 = arith.constant 0 : i32
    %c0_i32_1 = arith.constant 0 : i32
    return %c0_i32, %c0_i32_0 : i32, i32
  }
  func.func @transform_6(%arg0: i32) -> (i32, i32) {
    %c0_i32 = arith.constant 0 : i32
    %c0_i32_0 = arith.constant 0 : i32
    %c0_i32_1 = arith.constant 0 : i32
    return %c0_i32, %c0_i32_0 : i32, i32
  }
  func.func @transform_7(%arg0: i32) -> (i32, i32) {
    %c0_i32 = arith.constant 0 : i32
    %c0_i32_0 = arith.constant 0 : i32
    %c0_i32_1 = arith.constant 0 : i32
    return %c0_i32, %c0_i32_0 : i32, i32
  }
  func.func @transform_8(%arg0: i32) -> (i32, i32) {
    %c0_i32 = arith.constant 0 : i32
    %c0_i32_0 = arith.constant 0 : i32
    return %arg0, %c0_i32 : i32, i32
  }
}

</mosaic_0001>

<llo_original>
// kernel: tpu_custom_call.1
$region0: #{tpu_custom_call.1}
  #allocation0 [shape = 'u32[]', space=smem, size = 0x4, offset = 0x4, fixed_abs, tag = 'smem constant byte address 0x4 - core index']
  #allocation1 [shape = 'u32[144,128]{1,0:T(1,128)}', space=vmem, size = 0x12000, scoped, tag = 'internal scratch']
  %s0 = inlined_call_operand.hbm [shape: f32[16,16], index: 0, kind: input, shape index: {}]
  %s1 = inlined_call_operand.hbm [shape: f32[16,16], index: 1, kind: input, shape index: {}]
  %s2 = inlined_call_operand.hbm [shape: bf16[16,32], index: 2, kind: input, shape index: {}]
  %s3 = inlined_call_operand.vmem [shape: f32[1,32], index: 3, kind: input, shape index: {}]
  %s4 = inlined_call_operand.hbm [shape: bf16[32,32], index: 4, kind: input, shape index: {}]
  %s5 = inlined_call_operand.vmem [shape: f32[1,32], index: 5, kind: input, shape index: {}]
  %s6 = inlined_call_operand.vmem [shape: bf16[32,128], index: 6, kind: input, shape index: {}]
  %s7 = inlined_call_operand.vmem [shape: f32[1,128], index: 7, kind: input, shape index: {}]
  %s8 = inlined_call_operand.hbm [shape: f32[16,128], index: 8, kind: output, shape index: {}]
  %s9 = sld [smem:[#allocation0]]
  $region81: #{tpu_custom_call.1} parent=0
    _
  %s11 = ssub.s32 1, %s9
  %s12 = scalar_select 0, %s11, %s9
  $region1: #{tpu_custom_call.1} parent=0
    #allocation2 [shape = 'u8[8192]{0}', space=vmem, size = 0x2000, scoped, tag = 'input window, operand 0']
    #allocation3 [shape = 's32[2]{0}', space=sflag, size = 0x8, scoped, tag = 'scoped memory for tpu_custom_call.1']
    #allocation4 [shape = 's32[2]{0}', space=sflag, size = 0x8, scoped, tag = 'scoped memory for tpu_custom_call.1']
    #allocation5 [shape = 'u8[8192]{0}', space=vmem, size = 0x2000, scoped, tag = 'input window, operand 1']
    #allocation6 [shape = 's32[2]{0}', space=sflag, size = 0x8, scoped, tag = 'scoped memory for tpu_custom_call.1']
    #allocation7 [shape = 'u8[4096]{0}', space=vmem, size = 0x1000, scoped, tag = 'input window, operand 2, single buffered']
    #allocation8 [shape = 'u8[8192]{0}', space=vmem, size = 0x2000, scoped, tag = 'input window, operand 4, single buffered']
    #allocation9 [shape = 's32[1]{0}', space=sflag, size = 0x4, scoped, tag = 'scoped memory for tpu_custom_call.1']
    #allocation10 [shape = 'u8[8192]{0}', space=vmem, size = 0x2000, scoped, tag = 'output window, operand 0']
    %13 = vsyncpa [#allocation3], 0
    %s14 = scalar_lea.sflag [#allocation3], 1
    %15 = vsyncpa %s14, 0
    %16 = vsyncpa [#allocation6], 0
    %s17 = scalar_lea.sflag [#allocation6], 1
    %18 = vsyncpa %s17, 0
    %19 = vsyncpa [#allocation9], 0
    %20 = vsyncpa [#allocation4], 0
    %s21 = scalar_lea.sflag [#allocation4], 1
    %22 = vsyncpa %s21, 0
    loop: start=0, step=1, limit=4
    $region2: #{tpu_custom_call.1} parent=1 // loop_pre_header
      _
    $region3: #{tpu_custom_call.1} parent=1 // loop_header
      %s24 = sphi 0, %s28
      %p25 = scmp.ge.s32.totalorder %s24, 4
      %s34 = sphi 0, %s36
      %s37 = sphi 0, %s34
      %s38 = sphi 0, %s37
      %s54 = sphi 0, %s38
      %s60 = sphi 0, %s62
      %s63 = sphi 0, %s60
      %s64 = sphi 0, %s63
      %s80 = sphi 0, %s64
      %s84 = sphi 0, %s84
      %s86 = sphi 0, %s84
      %s87 = sphi 0, %s86
      %s101 = sphi 0, %s87
      %s105 = sphi 0, %s105
      %s107 = sphi 0, %s105
      %s108 = sphi 0, %s107
      %s122 = sphi 0, %s108
      %s126 = sphi 0, %s126
      %s128 = sphi 0, %s126
      %s129 = sphi 0, %s128
      %s143 = sphi 0, %s129
      %s147 = sphi 0, %s147
      %s149 = sphi 0, %s147
      %s150 = sphi 0, %s149
      %s164 = sphi 0, %s150
      %s168 = sphi 0, %s168
      %s170 = sphi 0, %s168
      %s171 = sphi 0, %s170
      %s185 = sphi 0, %s171
      %s189 = sphi 0, %s189
      %s191 = sphi 0, %s189
      %s192 = sphi 0, %s191
      %s206 = sphi 0, %s192
      %s212 = sphi 0, %s214
      %s215 = sphi 0, %s212
      %s216 = sphi 0, %s215
      %s232 = sphi 0, %s216
    $region4: #{tpu_custom_call.1} parent=1 // loop_header_branch
      %27 = sbr.rel (%p25) target = $region8
    $region5: #{tpu_custom_call.1} parent=1 // loop_body
      %s29 = ssub.s32 %s24, 1
      %s30 = ssub.s32 %s24, 2
      %s31 = sadd.s32 %s24, 1
      %s32 = ssub.s32 %s24, %s31
      %p33 = scmp.eq.s32.totalorder %s32, 0
      %s35 = sadd.s32 %s34, 1
      %s36 = scalar_select %p33, %s34, %s35
      %p39 = pneg %p33
      %p40 = scmp.eq.s32.totalorder %s24, 1
      %p41 = por %p39, %p40
      %p42 = scmp.ne.s32.totalorder %s34, %s37
      %p43 = scmp.eq.s32.totalorder %s24, 0
      %p44 = por %p42, %p43
      %p45 = scmp.ne.s32.totalorder %s34, %s37
      %p46 = scmp.eq.s32.totalorder %s29, 1
      %p47 = por %p45, %p46
      %p48 = scmp.ne.s32.totalorder %s37, %s38
      %p49 = scmp.eq.s32.totalorder %s29, 0
      %p50 = por %p48, %p49
      %p51 = scmp.ne.s32.totalorder %s37, %s38
      %p52 = scmp.eq.s32.totalorder %s30, 1
      %p53 = por %p51, %p52
      %p55 = scmp.ne.s32.totalorder %s38, %s54
      %p56 = scmp.eq.s32.totalorder %s30, 0
      %p57 = por %p55, %p56
      %s58 = ssub.s32 %s24, %s31
      %p59 = scmp.eq.s32.totalorder %s58, 0
      %s61 = sadd.s32 %s60, 1
      %s62 = scalar_select %p59, %s60, %s61
      %p65 = pneg %p59
      %p66 = scmp.eq.s32.totalorder %s24, 1
      %p67 = por %p65, %p66
      %p68 = scmp.ne.s32.totalorder %s60, %s63
      %p69 = scmp.eq.s32.totalorder %s24, 0
      %p70 = por %p68, %p69
      %p71 = scmp.ne.s32.totalorder %s60, %s63
      %p72 = scmp.eq.s32.totalorder %s29, 1
      %p73 = por %p71, %p72
      %p74 = scmp.ne.s32.totalorder %s63, %s64
      %p75 = scmp.eq.s32.totalorder %s29, 0
      %p76 = por %p74, %p75
      %p77 = scmp.ne.s32.totalorder %s63, %s64
      %p78 = scmp.eq.s32.totalorder %s30, 1
      %p79 = por %p77, %p78
      %p81 = scmp.ne.s32.totalorder %s64, %s80
      %p82 = scmp.eq.s32.totalorder %s30, 0
      %p83 = por %p81, %p82
      %s85 = sadd.s32 %s84, 1
      %p88 = scmp.eq.s32.totalorder %s24, 1
      %p89 = scmp.ne.s32.totalorder %s84, %s86
      %p90 = scmp.eq.s32.totalorder %s24, 0
      %p91 = por %p89, %p90
      %p92 = scmp.ne.s32.totalorder %s84, %s86
      %p93 = scmp.eq.s32.totalorder %s29, 1
      %p94 = por %p92, %p93
      %p95 = scmp.ne.s32.totalorder %s86, %s87
      %p96 = scmp.eq.s32.totalorder %s29, 0
      %p97 = por %p95, %p96
      %p98 = scmp.ne.s32.totalorder %s86, %s87
      %p99 = scmp.eq.s32.totalorder %s30, 1
      %p100 = por %p98, %p99
      %p102 = scmp.ne.s32.totalorder %s87, %s101
      %p103 = scmp.eq.s32.totalorder %s30, 0
      %p104 = por %p102, %p103
      %s106 = sadd.s32 %s105, 1
      %p109 = scmp.eq.s32.totalorder %s24, 1
      %p110 = scmp.ne.s32.totalorder %s105, %s107
      %p111 = scmp.eq.s32.totalorder %s24, 0
      %p112 = por %p110, %p111
      %p113 = scmp.ne.s32.totalorder %s105, %s107
      %p114 = scmp.eq.s32.totalorder %s29, 1
      %p115 = por %p113, %p114
      %p116 = scmp.ne.s32.totalorder %s107, %s108
      %p117 = scmp.eq.s32.totalorder %s29, 0
      %p118 = por %p116, %p117
      %p119 = scmp.ne.s32.totalorder %s107, %s108
      %p120 = scmp.eq.s32.totalorder %s30, 1
      %p121 = por %p119, %p120
      %p123 = scmp.ne.s32.totalorder %s108, %s122
      %p124 = scmp.eq.s32.totalorder %s30, 0
      %p125 = por %p123, %p124
      %s127 = sadd.s32 %s126, 1
      %p130 = scmp.eq.s32.totalorder %s24, 1
      %p131 = scmp.ne.s32.totalorder %s126, %s128
      %p132 = scmp.eq.s32.totalorder %s24, 0
      %p133 = por %p131, %p132
      %p134 = scmp.ne.s32.totalorder %s126, %s128
      %p135 = scmp.eq.s32.totalorder %s29, 1
      %p136 = por %p134, %p135
      %p137 = scmp.ne.s32.totalorder %s128, %s129
      %p138 = scmp.eq.s32.totalorder %s29, 0
      %p139 = por %p137, %p138
      %p140 = scmp.ne.s32.totalorder %s128, %s129
      %p141 = scmp.eq.s32.totalorder %s30, 1
      %p142 = por %p140, %p141
      %p144 = scmp.ne.s32.totalorder %s129, %s143
      %p145 = scmp.eq.s32.totalorder %s30, 0
      %p146 = por %p144, %p145
      %s148 = sadd.s32 %s147, 1
      %p151 = scmp.eq.s32.totalorder %s24, 1
      %p152 = scmp.ne.s32.totalorder %s147, %s149
      %p153 = scmp.eq.s32.totalorder %s24, 0
      %p154 = por %p152, %p153
      %p155 = scmp.ne.s32.totalorder %s147, %s149
      %p156 = scmp.eq.s32.totalorder %s29, 1
      %p157 = por %p155, %p156
      %p158 = scmp.ne.s32.totalorder %s149, %s150
      %p159 = scmp.eq.s32.totalorder %s29, 0
      %p160 = por %p158, %p159
      %p161 = scmp.ne.s32.totalorder %s149, %s150
      %p162 = scmp.eq.s32.totalorder %s30, 1
      %p163 = por %p161, %p162
      %p165 = scmp.ne.s32.totalorder %s150, %s164
      %p166 = scmp.eq.s32.totalorder %s30, 0
      %p167 = por %p165, %p166
      %s169 = sadd.s32 %s168, 1
      %p172 = scmp.eq.s32.totalorder %s24, 1
      %p173 = scmp.ne.s32.totalorder %s168, %s170
      %p174 = scmp.eq.s32.totalorder %s24, 0
      %p175 = por %p173, %p174
      %p176 = scmp.ne.s32.totalorder %s168, %s170
      %p177 = scmp.eq.s32.totalorder %s29, 1
      %p178 = por %p176, %p177
      %p179 = scmp.ne.s32.totalorder %s170, %s171
      %p180 = scmp.eq.s32.totalorder %s29, 0
      %p181 = por %p179, %p180
      %p182 = scmp.ne.s32.totalorder %s170, %s171
      %p183 = scmp.eq.s32.totalorder %s30, 1
      %p184 = por %p182, %p183
      %p186 = scmp.ne.s32.totalorder %s171, %s185
      %p187 = scmp.eq.s32.totalorder %s30, 0
      %p188 = por %p186, %p187
      %s190 = sadd.s32 %s189, 1
      %p193 = scmp.eq.s32.totalorder %s24, 1
      %p194 = scmp.ne.s32.totalorder %s189, %s191
      %p195 = scmp.eq.s32.totalorder %s24, 0
      %p196 = por %p194, %p195
      %p197 = scmp.ne.s32.totalorder %s189, %s191
      %p198 = scmp.eq.s32.totalorder %s29, 1
      %p199 = por %p197, %p198
      %p200 = scmp.ne.s32.totalorder %s191, %s192
      %p201 = scmp.eq.s32.totalorder %s29, 0
      %p202 = por %p200, %p201
      %p203 = scmp.ne.s32.totalorder %s191, %s192
      %p204 = scmp.eq.s32.totalorder %s30, 1
      %p205 = por %p203, %p204
      %p207 = scmp.ne.s32.totalorder %s192, %s206
      %p208 = scmp.eq.s32.totalorder %s30, 0
      %p209 = por %p207, %p208
      %s210 = ssub.s32 %s24, %s31
      %p211 = scmp.eq.s32.totalorder %s210, 0
      %s213 = sadd.s32 %s212, 1
      %s214 = scalar_select %p211, %s212, %s213
      %p217 = pneg %p211
      %p218 = scmp.eq.s32.totalorder %s24, 1
      %p219 = por %p217, %p218
      %p220 = scmp.ne.s32.totalorder %s212, %s215
      %p221 = scmp.eq.s32.totalorder %s24, 0
      %p222 = por %p220, %p221
      %p223 = scmp.ne.s32.totalorder %s212, %s215
      %p224 = scmp.eq.s32.totalorder %s29, 1
      %p225 = por %p223, %p224
      %p226 = scmp.ne.s32.totalorder %s215, %s216
      %p227 = scmp.eq.s32.totalorder %s29, 0
      %p228 = por %p226, %p227
      %p229 = scmp.ne.s32.totalorder %s215, %s216
      %p230 = scmp.eq.s32.totalorder %s30, 1
      %p231 = por %p229, %p230
      %p233 = scmp.ne.s32.totalorder %s216, %s232
      %p234 = scmp.eq.s32.totalorder %s30, 0
      %p235 = por %p233, %p234
      %p236 = scmp.le.s32.totalorder 1, %s24
      %p237 = scmp.lt.s32.totalorder %s24, 3
      %p238 = pnand %p236, %p237
      %p239 = pneg %p238
      // Predicated region
      $region9: #{tpu_custom_call.1} parent=5 // pred_check
        _
      $region10: #{tpu_custom_call.1} parent=5 // pred_check_branch
        %241 = sbr.rel (%p238) target = $region12
      $region11: #{tpu_custom_call.1} parent=5 // pred_region
        %s242 = ssub.s32 %s24, 1
        // Predicated region
        $region13: #{tpu_custom_call.1} parent=11 // pred_check
          %p243 = pneg %p97
        $region14: #{tpu_custom_call.1} parent=11 // pred_check_branch
          %245 = sbr.rel (%p243) target = $region16
        $region15: #{tpu_custom_call.1} parent=11 // pred_region
          %s247 = ssub.s32 128, 128
          %248 = vsyncadd [#allocation6], %s247
          %s249 = sshll.u32 [#allocation7], 4
          %s250 = int_to_ptr.vmem [resolvable:$true] %s249
          %255 = dma.hbm_to_vmem [thread:$0]  %s2, 128, %s250, [#allocation6], 64, 64, 4
        $region16: #{tpu_custom_call.1} parent=11 // pred_fallthru
          _
        // Predicated region
        $region17: #{tpu_custom_call.1} parent=11 // pred_check
          %p256 = pneg %p118
        $region18: #{tpu_custom_call.1} parent=11 // pred_check_branch
          %258 = sbr.rel (%p256) target = $region20
        $region19: #{tpu_custom_call.1} parent=11 // pred_region
          _
        $region20: #{tpu_custom_call.1} parent=11 // pred_fallthru
          _
        // Predicated region
        $region21: #{tpu_custom_call.1} parent=11 // pred_check
          %p259 = pneg %p139
        $region22: #{tpu_custom_call.1} parent=11 // pred_check_branch
          %261 = sbr.rel (%p259) target = $region24
        $region23: #{tpu_custom_call.1} parent=11 // pred_region
          %s263 = ssub.s32 256, 256
          %264 = vsyncadd [#allocation9], %s263
          %s265 = sshll.u32 [#allocation8], 4
          %s266 = int_to_ptr.vmem [resolvable:$true] %s265
          %271 = dma.hbm_to_vmem [thread:$0]  %s4, 256, %s266, [#allocation9], 64, 64, 4
        $region24: #{tpu_custom_call.1} parent=11 // pred_fallthru
          _
        // Predicated region
        $region25: #{tpu_custom_call.1} parent=11 // pred_check
          %p272 = pneg %p160
        $region26: #{tpu_custom_call.1} parent=11 // pred_check_branch
          %274 = sbr.rel (%p272) target = $region28
        $region27: #{tpu_custom_call.1} parent=11 // pred_region
          _
        $region28: #{tpu_custom_call.1} parent=11 // pred_fallthru
          _
        // Predicated region
        $region29: #{tpu_custom_call.1} parent=11 // pred_check
          %p275 = pneg %p181
        $region30: #{tpu_custom_call.1} parent=11 // pred_check_branch
          %277 = sbr.rel (%p275) target = $region32
        $region31: #{tpu_custom_call.1} parent=11 // pred_region
          _
        $region32: #{tpu_custom_call.1} parent=11 // pred_fallthru
          _
        // Predicated region
        $region33: #{tpu_custom_call.1} parent=11 // pred_check
          %p278 = pneg %p202
        $region34: #{tpu_custom_call.1} parent=11 // pred_check_branch
          %280 = sbr.rel (%p278) target = $region36
        $region35: #{tpu_custom_call.1} parent=11 // pred_region
          _
        $region36: #{tpu_custom_call.1} parent=11 // pred_fallthru
          _
      $region12: #{tpu_custom_call.1} parent=5 // pred_fallthru
        _
      %p281 = scmp.lt.s32.totalorder %s24, 2
      // Predicated region
      $region37: #{tpu_custom_call.1} parent=5 // pred_check
        %p282 = pneg %p281
      $region38: #{tpu_custom_call.1} parent=5 // pred_check_branch
        %284 = sbr.rel (%p282) target = $region40
      $region39: #{tpu_custom_call.1} parent=5 // pred_region
        // Predicated region
        $region41: #{tpu_custom_call.1} parent=39 // pred_check
          %p285 = pneg %p44
        $region42: #{tpu_custom_call.1} parent=39 // pred_check_branch
          %287 = sbr.rel (%p285) target = $region44
        $region43: #{tpu_custom_call.1} parent=39 // pred_region
          %s288 = sand.u32 %s34, 1
          %s289 = scalar_lea.sflag [#allocation3], %s288
          %s290 = sand.u32 %s34, 1
          %s291 = smul.addr %s290, 8
          %s292 = scalar_lea.vmem [#allocation2], %s291
          %s294 = ssub.s32 128, 128
          %295 = vsyncadd %s289, %s294
          %s296 = smul.addr %s24, 128
          %s297 = scalar_lea.hbm %s0, %s296
          %s299 = sshll.u32 %s292, 4
          %s300 = int_to_ptr.vmem [resolvable:$true] %s299
          %302 = dma.hbm_to_vmem [thread:$0]  %s297, 128, %s300, %s289
        $region44: #{tpu_custom_call.1} parent=39 // pred_fallthru
          _
        // Predicated region
        $region45: #{tpu_custom_call.1} parent=39 // pred_check
          %p303 = pneg %p70
        $region46: #{tpu_custom_call.1} parent=39 // pred_check_branch
          %305 = sbr.rel (%p303) target = $region48
        $region47: #{tpu_custom_call.1} parent=39 // pred_region
          %s306 = sand.u32 %s24, 1
          %s307 = scalar_lea.sflag [#allocation6], %s306
          %s308 = sand.u32 %s60, 1
          %s309 = smul.addr %s308, 8
          %s310 = scalar_lea.vmem [#allocation5], %s309
          %s312 = ssub.s32 128, 128
          %313 = vsyncadd %s307, %s312
          %s314 = smul.addr %s24, 128
          %s315 = scalar_lea.hbm %s1, %s314
          %s317 = sshll.u32 %s310, 4
          %s318 = int_to_ptr.vmem [resolvable:$true] %s317
          %320 = dma.hbm_to_vmem [thread:$0]  %s315, 128, %s318, %s307
        $region48: #{tpu_custom_call.1} parent=39 // pred_fallthru
          _
      $region40: #{tpu_custom_call.1} parent=5 // pred_fallthru
        _
      %p321 = scmp.le.s32.totalorder 1, %s24
      %p322 = scmp.lt.s32.totalorder %s24, 3
      %p323 = pnand %p321, %p322
      %p324 = pneg %p323
      // Predicated region
      $region49: #{tpu_custom_call.1} parent=5 // pred_check
        _
      $region50: #{tpu_custom_call.1} parent=5 // pred_check_branch
        %326 = sbr.rel (%p323) target = $region52
      $region51: #{tpu_custom_call.1} parent=5 // pred_region
        %s327 = ssub.s32 %s24, 1
        %s328 = sand.u32 %s37, 1
        %s329 = scalar_lea.sflag [#allocation3], %s328
        %s330 = sand.u32 %s37, 1
        %s331 = smul.addr %s330, 8
        %s332 = scalar_lea.vmem [#allocation2], %s331
        // Predicated region
        $region53: #{tpu_custom_call.1} parent=51 // pred_check
          %p333 = pneg %p50
        $region54: #{tpu_custom_call.1} parent=51 // pred_check_branch
          %335 = sbr.rel (%p333) target = $region56
        $region55: #{tpu_custom_call.1} parent=51 // pred_region
          %336 = dma.done %s329, 128
        $region56: #{tpu_custom_call.1} parent=51 // pred_fallthru
          _
        %s337 = sand.u32 %s29, 1
        %s338 = scalar_lea.sflag [#allocation6], %s337
        %s339 = sand.u32 %s63, 1
        %s340 = smul.addr %s339, 8
        %s341 = scalar_lea.vmem [#allocation5], %s340
        // Predicated region
        $region57: #{tpu_custom_call.1} parent=51 // pred_check
          %p342 = pneg %p76
        $region58: #{tpu_custom_call.1} parent=51 // pred_check_branch
          %344 = sbr.rel (%p342) target = $region60
        $region59: #{tpu_custom_call.1} parent=51 // pred_region
          %345 = dma.done %s338, 128
        $region60: #{tpu_custom_call.1} parent=51 // pred_fallthru
          _
        // Predicated region
        $region61: #{tpu_custom_call.1} parent=51 // pred_check
          %p346 = pneg %p97
        $region62: #{tpu_custom_call.1} parent=51 // pred_check_branch
          %348 = sbr.rel (%p346) target = $region64
        $region63: #{tpu_custom_call.1} parent=51 // pred_region
          %349 = dma.done [#allocation6], 128
        $region64: #{tpu_custom_call.1} parent=51 // pred_fallthru
          _
        // Predicated region
        $region65: #{tpu_custom_call.1} parent=51 // pred_check
          %p350 = pneg %p139
        $region66: #{tpu_custom_call.1} parent=51 // pred_check_branch
          %352 = sbr.rel (%p350) target = $region68
        $region67: #{tpu_custom_call.1} parent=51 // pred_region
          %353 = dma.done [#allocation9], 256
        $region68: #{tpu_custom_call.1} parent=51 // pred_fallthru
          _
        %s354 = sand.u32 %s37, 1
        %s355 = scalar_lea.sflag [#allocation3], %s354
        %s356 = sand.u32 %s37, 1
        %s357 = smul.addr %s356, 8
        %s358 = scalar_lea.vmem [#allocation2], %s357
        %p359 = pneg %p50
        %p360 = pneg %p47
        %s361 = sand.u32 %s29, 1
        %s362 = scalar_lea.sflag [#allocation6], %s361
        %s363 = sand.u32 %s63, 1
        %s364 = smul.addr %s363, 8
        %s365 = scalar_lea.vmem [#allocation5], %s364
        %p366 = pneg %p76
        %p367 = pneg %p73
        %p368 = pneg %p97
        %p369 = pneg %p94
        %p370 = pneg %p118
        %p371 = pneg %p115
        %p372 = pneg %p139
        %p373 = pneg %p136
        %p374 = pneg %p160
        %p375 = pneg %p157
        %p376 = pneg %p181
        %p377 = pneg %p178
        %p378 = pneg %p202
        %p379 = pneg %p199
        %p380 = pneg %p228
        %p381 = pneg %p225
        %s382 = sand.u32 %s215, 1
        %s383 = scalar_lea.sflag [#allocation4], %s382
        %s384 = sand.u32 %s215, 1
        %s385 = smul.addr %s384, 8
        %s386 = scalar_lea.vmem [#allocation10], %s385
        %v388 = vld [vmem:[%s332] sm:$0xff]
        %v389 = vld [vmem:[%s341] sm:$0xff]
        %v390 = vpack.c.bf16 %v389, %v388
        %v391 = vld [vmem:[#allocation7] sm:$0xf]
        %v392 = vld [vmem:[#allocation7 + $0x4] sm:$0xf]
        %v393 = vld [vmem:[%s3] sm:$0x1]
        %v395 = vlaneseq
        %v396 = vshrl.u32 %v395, 7
        %v397 = vsub.s32 0, %v396
        %v398 = vrot.slane %v393, %v397
        %v402 = vunpack.c.l.b16 %v391
        %v403 = vunpack.c.l.b16 %v392
        %v404 = vpack.c.b16 %v403, %v402
        %vm406 = vcmask 130048
        %v408 = vsel %vm406, %v390, 0
        %410 = vmatprep.subr.bf16.mxu0 0
        %411 = vmatpush1.bf16.msra.mxu0 %v404
        %412 = vmatprep.subr.bf16.mxu0 0
        %413 = vmatpush1.bf16.msra.mxu0 0
        %414 = vmatprep.subr.bf16.mxu0 0
        %415 = vmatpush1.bf16.msra.mxu0 0
        %416 = vmatprep.subr.bf16.mxu0 0
        %417 = vmatpush1.bf16.msra.mxu0 0
        %418 = vmatprep.subr.bf16.mxu0 0
        %419 = vmatpush1.bf16.msra.mxu0 0
        %420 = vmatprep.subr.bf16.mxu0 0
        %421 = vmatpush1.bf16.msra.mxu0 0
        %422 = vmatprep.subr.bf16.mxu0 0
        %423 = vmatpush1.bf16.msra.mxu0 0
        %424 = vmatprep.subr.bf16.mxu0 0
        %425 = vmatpush1.bf16.msra.mxu0 0
        %426 = vmatprep.subr.bf16.mxu0 0
        %427 = vmatpush1.bf16.msra.mxu0 0
        %428 = vmatprep.subr.bf16.mxu0 0
        %429 = vmatpush1.bf16.msra.mxu0 0
        %430 = vmatprep.subr.bf16.mxu0 0
        %431 = vmatpush1.bf16.msra.mxu0 0
        %432 = vmatprep.subr.bf16.mxu0 0
        %433 = vmatpush1.bf16.msra.mxu0 0
        %434 = vmatprep.subr.bf16.mxu0 0
        %435 = vmatpush1.bf16.msra.mxu0 0
        %436 = vmatprep.subr.bf16.mxu0 0
        %437 = vmatpush1.bf16.msra.mxu0 0
        %438 = vmatprep.subr.bf16.mxu0 0
        %439 = vmatpush1.bf16.msra.mxu0 0
        %440 = vmatprep.subr.bf16.mxu0 0
        %441 = vmatpush1.bf16.msra.mxu0 0
        %442 = vmatprep.mubr.bf16.mxu0 0
        %443 = vmatmul.mubr.bf16.gmra.mrb[0].mxu0 %v408
        %v444 = vpop.f32.mrb[0].mxu0
        %v445 = vadd.f32 %v398, %v444
        %v446 = vpop.f32.mrb[0].mxu0
        %v447 = vpop.f32.mrb[0].mxu0
        %v448 = vadd.f32 %v398, %v447
        %v449 = vpop.f32.mrb[0].mxu0
        %450 = vdwg.mxu0
        %v451 = vmax.f32 %v445, 0.0
        %v452 = vmax.f32 %v448, 0.0
        %v453 = vpack.c.bf16 %v452, %v451
        %v454 = vld [vmem:[#allocation8] sm:$0xf]
        %v455 = vld [vmem:[#allocation8 + $0x4] sm:$0xf]
        %v456 = vld [vmem:[#allocation8 + $0x8] sm:$0xf]
        %v457 = vld [vmem:[#allocation8 + $0xc] sm:$0xf]
        %v458 = vld [vmem:[%s5] sm:$0x1]
        %v460 = vlaneseq
        %v461 = vshrl.u32 %v460, 7
        %v462 = vsub.s32 0, %v461
        %v463 = vrot.slane %v458, %v462
        %v469 = vunpack.c.l.b16 %v454
        %v470 = vunpack.c.l.b16 %v455
        %v471 = vunpack.c.l.b16 %v456
        %v472 = vunpack.c.l.b16 %v457
        %v473 = vpack.c.b16 %v470, %v469
        %v474 = vpack.c.b16 %v472, %v471
        %vm477 = vcmask 261120
        %v479 = vsel %vm477, %v453, 0
        %481 = vmatprep.subr.bf16.mxu0 0
        %482 = vmatpush1.bf16.msra.mxu0 %v473
        %483 = vmatprep.subr.bf16.mxu0 0
        %484 = vmatpush1.bf16.msra.mxu0 %v474
        %485 = vmatprep.subr.bf16.mxu0 0
        %486 = vmatpush1.bf16.msra.mxu0 0
        %487 = vmatprep.subr.bf16.mxu0 0
        %488 = vmatpush1.bf16.msra.mxu0 0
        %489 = vmatprep.subr.bf16.mxu0 0
        %490 = vmatpush1.bf16.msra.mxu0 0
        %491 = vmatprep.subr.bf16.mxu0 0
        %492 = vmatpush1.bf16.msra.mxu0 0
        %493 = vmatprep.subr.bf16.mxu0 0
        %494 = vmatpush1.bf16.msra.mxu0 0
        %495 = vmatprep.subr.bf16.mxu0 0
        %496 = vmatpush1.bf16.msra.mxu0 0
        %497 = vmatprep.subr.bf16.mxu0 0
        %498 = vmatpush1.bf16.msra.mxu0 0
        %499 = vmatprep.subr.bf16.mxu0 0
        %500 = vmatpush1.bf16.msra.mxu0 0
        %501 = vmatprep.subr.bf16.mxu0 0
        %502 = vmatpush1.bf16.msra.mxu0 0
        %503 = vmatprep.subr.bf16.mxu0 0
        %504 = vmatpush1.bf16.msra.mxu0 0
        %505 = vmatprep.subr.bf16.mxu0 0
        %506 = vmatpush1.bf16.msra.mxu0 0
        %507 = vmatprep.subr.bf16.mxu0 0
        %508 = vmatpush1.bf16.msra.mxu0 0
        %509 = vmatprep.subr.bf16.mxu0 0
        %510 = vmatpush1.bf16.msra.mxu0 0
        %511 = vmatprep.subr.bf16.mxu0 0
        %512 = vmatpush1.bf16.msra.mxu0 0
        %513 = vmatprep.mubr.bf16.mxu0 0
        %514 = vmatmul.mubr.bf16.gmra.mrb[0].mxu0 %v479
        %v515 = vpop.f32.mrb[0].mxu0
        %v516 = vadd.f32 %v463, %v515
        %v517 = vpop.f32.mrb[0].mxu0
        %v518 = vpop.f32.mrb[0].mxu0
        %v519 = vadd.f32 %v463, %v518
        %v520 = vpop.f32.mrb[0].mxu0
        %521 = vdwg.mxu0
        %v522 = vmax.f32 %v516, 0.0
        %v523 = vmax.f32 %v519, 0.0
        %v524 = vpack.c.bf16 %v523, %v522
        %v525 = vld [vmem:[%s6] sm:$0xf]
        %v526 = vld [vmem:[%s6 + $0x4] sm:$0xf]
        %v527 = vld [vmem:[%s6 + $0x8] sm:$0xf]
        %v528 = vld [vmem:[%s6 + $0xc] sm:$0xf]
        %v529 = vld [vmem:[%s7] sm:$0x1]
        %v531 = vlaneseq
        %v532 = vshrl.u32 %v531, 7
        %v533 = vsub.s32 0, %v532
        %v534 = vrot.slane %v529, %v533
        %v540 = vunpack.c.l.b16 %v525
        %v541 = vunpack.c.l.b16 %v526
        %v542 = vunpack.c.l.b16 %v527
        %v543 = vunpack.c.l.b16 %v528
        %v544 = vpack.c.b16 %v541, %v540
        %v545 = vpack.c.b16 %v543, %v542
        %v549 = vsel %vm477, %v524, 0
        %551 = vmatprep.subr.bf16.mxu0 0
        %552 = vmatpush1.bf16.msra.mxu0 %v544
        %553 = vmatprep.subr.bf16.mxu0 0
        %554 = vmatpush1.bf16.msra.mxu0 %v545
        %555 = vmatprep.subr.bf16.mxu0 0
        %556 = vmatpush1.bf16.msra.mxu0 0
        %557 = vmatprep.subr.bf16.mxu0 0
        %558 = vmatpush1.bf16.msra.mxu0 0
        %559 = vmatprep.subr.bf16.mxu0 0
        %560 = vmatpush1.bf16.msra.mxu0 0
        %561 = vmatprep.subr.bf16.mxu0 0
        %562 = vmatpush1.bf16.msra.mxu0 0
        %563 = vmatprep.subr.bf16.mxu0 0
        %564 = vmatpush1.bf16.msra.mxu0 0
        %565 = vmatprep.subr.bf16.mxu0 0
        %566 = vmatpush1.bf16.msra.mxu0 0
        %567 = vmatprep.subr.bf16.mxu0 0
        %568 = vmatpush1.bf16.msra.mxu0 0
        %569 = vmatprep.subr.bf16.mxu0 0
        %570 = vmatpush1.bf16.msra.mxu0 0
        %571 = vmatprep.subr.bf16.mxu0 0
        %572 = vmatpush1.bf16.msra.mxu0 0
        %573 = vmatprep.subr.bf16.mxu0 0
        %574 = vmatpush1.bf16.msra.mxu0 0
        %575 = vmatprep.subr.bf16.mxu0 0
        %576 = vmatpush1.bf16.msra.mxu0 0
        %577 = vmatprep.subr.bf16.mxu0 0
        %578 = vmatpush1.bf16.msra.mxu0 0
        %579 = vmatprep.subr.bf16.mxu0 0
        %580 = vmatpush1.bf16.msra.mxu0 0
        %581 = vmatprep.subr.bf16.mxu0 0
        %582 = vmatpush1.bf16.msra.mxu0 0
        %583 = vmatprep.mubr.bf16.mxu0 0
        %584 = vmatmul.mubr.bf16.gmra.mrb[0].mxu0 %v549
        %v585 = vpop.f32.mrb[0].mxu0
        %v586 = vadd.f32 %v534, %v585
        %v587 = vpop.f32.mrb[0].mxu0
        %v588 = vpop.f32.mrb[0].mxu0
        %v589 = vadd.f32 %v534, %v588
        %v590 = vpop.f32.mrb[0].mxu0
        %591 = vdwg.mxu0
        %v592 = vsub.f32 0.0, %v586
        %v593 = vmul.f32 %v592, 1.442695
        %v594 = vpow.pop %v593
        %v595 = vadd.f32 %v594, 1.0
        %v596 = vsub.f32 0.0, %v589
        %v597 = vmul.f32 %v596, 1.442695
        %v598 = vpow.pop %v597
        %v599 = vadd.f32 %v598, 1.0
        %v600 = vmul.f32 %v595, %v599
        %v601 = vrcp.pop %v600
        %602 = vst [vmem:[%s386] sm:$0xff] %v601
        %s603 = sand.u32 %s215, 1
        %s604 = scalar_lea.sflag [#allocation4], %s603
        %s605 = sand.u32 %s215, 1
        %s606 = smul.addr %s605, 8
        %s607 = scalar_lea.vmem [#allocation10], %s606
        // Predicated region
        $region69: #{tpu_custom_call.1} parent=51 // pred_check
          %p608 = pneg %p225
        $region70: #{tpu_custom_call.1} parent=51 // pred_check_branch
          %610 = sbr.rel (%p608) target = $region72
        $region71: #{tpu_custom_call.1} parent=51 // pred_region
          %s612 = ssub.s32 128, 128
          %613 = vsyncadd %s604, %s612
          %s614 = smul.addr %s29, 128
          %s615 = scalar_lea.hbm %s8, %s614
          %s617 = sshll.u32 %s607, 4
          %s618 = int_to_ptr.vmem [resolvable:$true] %s617
          %620 = dma.vmem_to_hbm [thread:$0]  %s618, 128, %s615, %s604
        $region72: #{tpu_custom_call.1} parent=51 // pred_fallthru
          _
      $region52: #{tpu_custom_call.1} parent=5 // pred_fallthru
        _
      %p621 = scmp.le.s32.totalorder 2, %s24
      // Predicated region
      $region73: #{tpu_custom_call.1} parent=5 // pred_check
        %p622 = pneg %p621
      $region74: #{tpu_custom_call.1} parent=5 // pred_check_branch
        %624 = sbr.rel (%p622) target = $region76
      $region75: #{tpu_custom_call.1} parent=5 // pred_region
        %s625 = ssub.s32 %s24, 2
        // Predicated region
        $region77: #{tpu_custom_call.1} parent=75 // pred_check
          %p626 = pneg %p231
        $region78: #{tpu_custom_call.1} parent=75 // pred_check_branch
          %628 = sbr.rel (%p626) target = $region80
        $region79: #{tpu_custom_call.1} parent=75 // pred_region
          %s629 = sand.u32 %s216, 1
          %s630 = scalar_lea.sflag [#allocation4], %s629
          %s631 = sand.u32 %s216, 1
          %s632 = smul.addr %s631, 8
          %s633 = scalar_lea.vmem [#allocation10], %s632
          %634 = dma.done %s630, 128
        $region80: #{tpu_custom_call.1} parent=75 // pred_fallthru
          _
      $region76: #{tpu_custom_call.1} parent=5 // pred_fallthru
        _
    $region6: #{tpu_custom_call.1} parent=1 // loop_footer
      %s28 = sadd.s32 1, %s24
    $region7: #{tpu_custom_call.1} parent=1 // loop_footer_branch
      %23 = sbr.rel target = $region3
    $region8: #{tpu_custom_call.1} parent=1 // loop_exit
      _
    %635 = vsyncpa [#allocation3], 1
    %s636 = scalar_lea.sflag [#allocation3], 1
    %637 = vsyncpa %s636, 1
    %638 = vsyncpa [#allocation6], 1
    %s639 = scalar_lea.sflag [#allocation6], 1
    %640 = vsyncpa %s639, 1
    %641 = vsyncpa [#allocation9], 1
    %642 = vsyncpa [#allocation4], 1
    %s643 = scalar_lea.sflag [#allocation4], 1
    %644 = vsyncpa %s643, 1

</llo_original>
